<compile_context>
chip_gen: v5e
topology: v5e:2x2
jax: 0.10.0
libtpu: 0.0.40
codegen_flags: <defaults>
</compile_context>

<pallas_src>
import jax
import jax.numpy as jnp
from jax.experimental import pallas as pl
from jax.experimental.pallas import tpu as pltpu  # noqa: F401  (TPU backend)


def _silence_kernel(x_ref, o_ref):
    # Output aliases the input HBM buffer (input_output_aliases={0: 0}); the
    # bytes are already in place, so there is intentionally nothing to do.
    # Both refs live in HBM (pl.ANY) -> Pallas issues no automatic DMAs that
    # could overwrite the aliased buffer.
    del x_ref, o_ref


def silence_forward(x):
    """Silence.forward(x) == x, with zero in-kernel data movement."""
    return pl.pallas_call(
        _silence_kernel,
        out_shape=jax.ShapeDtypeStruct(x.shape, x.dtype),
        in_specs=[pl.BlockSpec(memory_space=pl.ANY)],
        out_specs=pl.BlockSpec(memory_space=pl.ANY),
        input_output_aliases={0: 0},
    )(x)


if __name__ == "__main__":
    key = jax.random.PRNGKey(0)

    # Small shape consistent with the module's typical inputs (NCHW feature map).
    B, C, H, W = 2, 4, 16, 16
    x = jax.random.normal(key, (B, C, H, W), jnp.float32)

    out = silence_forward(x)
    out = jax.block_until_ready(out)

    assert out.shape == x.shape, (out.shape, x.shape)
    assert out.dtype == x.dtype, (out.dtype, x.dtype)
    assert bool(jnp.all(out == x)), "identity mismatch"

    print("KERNEL_OK")
</pallas_src>

<mosaic_0001>
module attributes {stable_mosaic.version = 11 : i64} {
  func.func @_silence_kernel(%arg0: memref<2x4x16x16xf32, #tpu.memory_space<any>>, %arg1: memref<2x4x16x16xf32, #tpu.memory_space<any>>) attributes {dimension_semantics = [], scalar_prefetch = 0 : i64, scratch_operands = 0 : i64, tpu.core_type = #tpu.core_type<tc>} {
    return
  }
}

</mosaic_0001>

<llo_original>
// kernel: tpu_custom_call.1
$region0: #{tpu_custom_call.1}
  #allocation0 [shape = 'u32[]', space=smem, size = 0x4, offset = 0x4, fixed_abs, tag = 'smem constant byte address 0x4 - core index']
  #allocation1 [shape = 'u32[72,128]{1,0:T(1,128)}', space=vmem, size = 0x9000, scoped, tag = 'internal scratch']
  %s0 = inlined_call_operand.hbm [shape: f32[2,4,16,16], index: 0, kind: input, shape index: {}, may-alias: {0,1}]
  %s1 = inlined_call_operand.hbm [shape: f32[2,4,16,16], index: 1, kind: output, shape index: {}, may-alias: {0,1}]
  %s2 = sld [smem:[#allocation0]]
  $region2: #{tpu_custom_call.1} parent=0
    _
  %s4 = ssub.s32 1, %s2
  %s5 = scalar_select 0, %s4, %s2

</llo_original>
